<compile_context>
chip_gen: v6e
topology: v6e:2x2x1
jax: 0.10.0
libtpu: 0.0.40
codegen_flags: <defaults>
</compile_context>

<pallas_src>
import math
import functools

import jax
import jax.numpy as jnp
from jax import lax
from jax.experimental import pallas as pl
from jax.experimental.pallas import tpu as pltpu


def _spatial_hetero_loss_kernel(z_ref, w_ref, o_ref, *, n_samples, n_proto,
                                tau, epsilon, sinkhorn_iters):
    # z_ref: (2N, C)  -- z1 rows then z2 rows, both views stacked
    # w_ref: (K, C)   -- prototype weights
    # o_ref: (1, 1)   -- scalar loss
    z = z_ref[...].astype(jnp.float32)
    w = w_ref[...].astype(jnp.float32)

    # --- L2 normalization along the feature (lane) dim --------------------
    z_n = z * lax.rsqrt(jnp.sum(z * z, axis=1, keepdims=True))
    w_n = w * lax.rsqrt(jnp.sum(w * w, axis=1, keepdims=True))

    # --- fused projection of BOTH views, directly in sinkhorn's transposed
    #     (K, 2N) layout; contracting dims avoid any explicit transpose -----
    scores_t = lax.dot_general(
        w_n, z_n,
        dimension_numbers=(((1,), (1,)), ((), ())),
        preferred_element_type=jnp.float32)                     # (K, 2N)

    N = n_samples
    s1_t = scores_t[:, :N]      # (K, N) == zc1.T
    s2_t = scores_t[:, N:]      # (K, N) == zc2.T

    def sinkhorn_t(s):
        # Identical math to the PyTorch sinkhorn (which works on Q = zc.T);
        # since we already hold the transposed scores we never transpose back.
        q = jnp.exp(s / epsilon)                                # (K, N)
        q = q / jnp.sum(q, keepdims=True)
        for _ in range(sinkhorn_iters):
            q = q / jnp.sum(q, axis=1, keepdims=True)           # row norm
            q = q / n_proto
            q = q / jnp.sum(q, axis=0, keepdims=True)           # col norm
            q = q / N
        return q * N                                            # == q.T of ref

    q1_t = sinkhorn_t(s1_t)
    q2_t = sinkhorn_t(s2_t)

    def log_softmax_over_k(s):
        # log_softmax over the prototype dim (rows / sublanes in this layout)
        y = s / tau
        y = y - jnp.max(y, axis=0, keepdims=True)
        return y - jnp.log(jnp.sum(jnp.exp(y), axis=0, keepdims=True))

    logp1_t = log_softmax_over_k(s1_t)
    logp2_t = log_softmax_over_k(s2_t)

    # l1 + l2 = -(1/N) * [ sum(q1 * logp2) + sum(q2 * logp1) ]
    total = jnp.sum(q1_t * logp2_t + q2_t * logp1_t, keepdims=True)   # (1, 1)
    o_ref[...] = (-total / N).astype(o_ref.dtype)


def spatial_hetero_loss_pallas(z1, z2, proto_w, *, tau=0.5, epsilon=0.05,
                               sinkhorn_iterations=3):
    """z1, z2: (n, l, v, c); proto_w: (K, c).  Returns scalar loss."""
    c = z1.shape[-1]
    z1f = z1.reshape(-1, c)
    z2f = z2.reshape(-1, c)
    n_samples = z1f.shape[0]
    n_proto = proto_w.shape[0]

    # Stack both views so the kernel does a single fused projection matmul.
    z_all = jnp.concatenate([z1f, z2f], axis=0)                  # (2N, C)

    kernel = functools.partial(
        _spatial_hetero_loss_kernel,
        n_samples=n_samples, n_proto=n_proto,
        tau=float(tau), epsilon=float(epsilon),
        sinkhorn_iters=int(sinkhorn_iterations))

    out = pl.pallas_call(
        kernel,
        out_shape=jax.ShapeDtypeStruct((1, 1), jnp.float32),
        grid_spec=pltpu.PrefetchScalarGridSpec(
            num_scalar_prefetch=0,
            grid=(1,),
            in_specs=[
                pl.BlockSpec((2 * n_samples, c), lambda i: (0, 0)),
                pl.BlockSpec((n_proto, c), lambda i: (0, 0)),
            ],
            out_specs=pl.BlockSpec((1, 1), lambda i: (0, 0)),
        ),
        compiler_params=pltpu.CompilerParams(
            dimension_semantics=("arbitrary",)),
    )(z_all, proto_w)
    return out[0, 0]


# --------------------------- pure-JAX reference ----------------------------
def _sinkhorn_ref(out, epsilon=0.05, sinkhorn_iterations=3):
    Q = jnp.exp(out / epsilon).T
    B = Q.shape[1]
    K = Q.shape[0]
    Q = Q / jnp.sum(Q)
    for _ in range(sinkhorn_iterations):
        Q = Q / jnp.sum(Q, axis=1, keepdims=True)
        Q = Q / K
        Q = Q / jnp.sum(Q, axis=0, keepdims=True)
        Q = Q / B
    Q = Q * B
    return Q.T


def spatial_hetero_loss_reference(z1, z2, proto_w, *, tau=0.5):
    c = z1.shape[-1]
    l2n = lambda x: x / jnp.linalg.norm(x, axis=1, keepdims=True)
    w_n = l2n(proto_w)
    zc1 = l2n(z1.reshape(-1, c)) @ w_n.T
    zc2 = l2n(z2.reshape(-1, c)) @ w_n.T
    q1 = _sinkhorn_ref(zc1)
    q2 = _sinkhorn_ref(zc2)
    lsm = lambda x: jax.nn.log_softmax(x / tau, axis=1)
    l1 = -jnp.mean(jnp.sum(q1 * lsm(zc2), axis=1))
    l2 = -jnp.mean(jnp.sum(q2 * lsm(zc1), axis=1))
    return l1 + l2


if __name__ == "__main__":
    # z shape "nlvc": batch=2, seq=4, vertices=16, channels(d_model)=32
    n, l, v, c = 2, 4, 16, 32
    nmb_prototype = 8
    tau = 0.5

    key = jax.random.PRNGKey(0)
    k1, k2, kw = jax.random.split(key, 3)
    z1 = jax.random.normal(k1, (n, l, v, c), jnp.float32)
    z2 = jax.random.normal(k2, (n, l, v, c), jnp.float32)

    # xavier_uniform init of the prototype Linear weight (K, C)
    limit = math.sqrt(6.0 / (nmb_prototype + c))
    proto_w = jax.random.uniform(kw, (nmb_prototype, c), jnp.float32,
                                 -limit, limit)

    loss = spatial_hetero_loss_pallas(z1, z2, proto_w, tau=tau)
    loss = jax.block_until_ready(loss)

    ref = spatial_hetero_loss_reference(z1, z2, proto_w, tau=tau)
    assert loss.shape == ()
    assert bool(jnp.isfinite(loss))
    assert jnp.allclose(loss, ref, atol=1e-4, rtol=1e-4), \
        f"pallas={loss} ref={ref} |diff|={abs(loss - ref)}"

    print("KERNEL_OK")
</pallas_src>

<mosaic_0001>
module attributes {stable_mosaic.version = 11 : i64} {
  func.func @_spatial_hetero_loss_kernel(%arg0: i32, %arg1: memref<256x32xf32, #tpu.memory_space<vmem>>, %arg2: memref<8x32xf32, #tpu.memory_space<vmem>>, %arg3: memref<1x1xf32, #tpu.memory_space<vmem>>) attributes {dimension_semantics = [#tpu.dimension_semantics<arbitrary>], iteration_bounds = array<i64: 1>, scalar_prefetch = 0 : i64, scratch_operands = 0 : i64, tpu.core_type = #tpu.core_type<tc>, window_params = [{pipeline_mode = #tpu.pipeline_mode<synchronous>, transform_indices = @transform_0, window_bounds = array<i64: 256, 32>}, {pipeline_mode = #tpu.pipeline_mode<synchronous>, transform_indices = @transform_1, window_bounds = array<i64: 8, 32>}, {pipeline_mode = #tpu.pipeline_mode<synchronous>, transform_indices = @transform_2, window_bounds = array<i64: 1, 1>}]} {
    %c0 = arith.constant 0 : index
    %c0_0 = arith.constant 0 : index
    %0 = vector.load %arg1[%c0, %c0_0] : memref<256x32xf32, #tpu.memory_space<vmem>>, vector<256x32xf32>
    %c0_1 = arith.constant 0 : index
    %c0_2 = arith.constant 0 : index
    %1 = vector.load %arg2[%c0_1, %c0_2] : memref<8x32xf32, #tpu.memory_space<vmem>>, vector<8x32xf32>
    %2 = arith.mulf %0, %0 : vector<256x32xf32>
    %cst = arith.constant dense<0.000000e+00> : vector<256xf32>
    %3 = vector.multi_reduction <add>, %2, %cst [1] : vector<256x32xf32> to vector<256xf32>
    %4 = vector.shape_cast %3 : vector<256xf32> to vector<256x1xf32>
    %5 = math.rsqrt %4 : vector<256x1xf32>
    %6 = vector.broadcast %5 : vector<256x1xf32> to vector<256x32xf32>
    %7 = arith.mulf %0, %6 : vector<256x32xf32>
    %8 = arith.mulf %1, %1 : vector<8x32xf32>
    %cst_3 = arith.constant dense<0.000000e+00> : vector<8xf32>
    %9 = vector.multi_reduction <add>, %8, %cst_3 [1] : vector<8x32xf32> to vector<8xf32>
    %10 = vector.shape_cast %9 : vector<8xf32> to vector<8x1xf32>
    %11 = math.rsqrt %10 : vector<8x1xf32>
    %12 = vector.broadcast %11 : vector<8x1xf32> to vector<8x32xf32>
    %13 = arith.mulf %1, %12 : vector<8x32xf32>
    %cst_4 = arith.constant dense<0.000000e+00> : vector<8x256xf32>
    %14 = tpu.matmul %13, %7, %cst_4 {dimension_numbers = #tpu.dot_dimension_numbers<[1], [1], [0], [0], [0, 0, 1, 0], [], []>} : vector<8x32xf32>, vector<256x32xf32>, vector<8x256xf32> -> vector<8x256xf32>
    %15 = vector.extract_strided_slice %14 {offsets = [0, 0], sizes = [8, 128], strides = [1, 1]} : vector<8x256xf32> to vector<8x128xf32>
    %16 = vector.extract_strided_slice %14 {offsets = [0, 128], sizes = [8, 128], strides = [1, 1]} : vector<8x256xf32> to vector<8x128xf32>
    %cst_5 = arith.constant 5.000000e-02 : f32
    %17 = vector.broadcast %cst_5 : f32 to vector<8x128xf32>
    %18 = arith.divf %15, %17 : vector<8x128xf32>
    %19 = math.exp %18 : vector<8x128xf32>
    %20 = vector.shape_cast %19 : vector<8x128xf32> to vector<1x8x128xf32>
    %cst_6 = arith.constant dense<0.000000e+00> : vector<1xf32>
    %21 = vector.multi_reduction <add>, %20, %cst_6 [1, 2] : vector<1x8x128xf32> to vector<1xf32>
    %22 = vector.shape_cast %21 : vector<1xf32> to vector<1x1x1xf32>
    %23 = vector.extract %22[0, 0, 0] : f32 from vector<1x1x1xf32>
    %24 = vector.broadcast %23 : f32 to vector<1x1xf32>
    %25 = vector.broadcast %24 : vector<1x1xf32> to vector<8x128xf32>
    %26 = arith.divf %19, %25 : vector<8x128xf32>
    %cst_7 = arith.constant dense<0.000000e+00> : vector<8xf32>
    %27 = vector.multi_reduction <add>, %26, %cst_7 [1] : vector<8x128xf32> to vector<8xf32>
    %28 = vector.shape_cast %27 : vector<8xf32> to vector<8x1xf32>
    %29 = vector.broadcast %28 : vector<8x1xf32> to vector<8x128xf32>
    %30 = arith.divf %26, %29 : vector<8x128xf32>
    %cst_8 = arith.constant 8.000000e+00 : f32
    %31 = vector.broadcast %cst_8 : f32 to vector<8x128xf32>
    %32 = arith.divf %30, %31 : vector<8x128xf32>
    %cst_9 = arith.constant dense<0.000000e+00> : vector<128xf32>
    %33 = vector.multi_reduction <add>, %32, %cst_9 [0] : vector<8x128xf32> to vector<128xf32>
    %34 = vector.shape_cast %33 : vector<128xf32> to vector<1x128xf32>
    %35 = vector.broadcast %34 : vector<1x128xf32> to vector<8x128xf32>
    %36 = arith.divf %32, %35 : vector<8x128xf32>
    %cst_10 = arith.constant 1.280000e+02 : f32
    %37 = vector.broadcast %cst_10 : f32 to vector<8x128xf32>
    %38 = arith.divf %36, %37 : vector<8x128xf32>
    %cst_11 = arith.constant dense<0.000000e+00> : vector<8xf32>
    %39 = vector.multi_reduction <add>, %38, %cst_11 [1] : vector<8x128xf32> to vector<8xf32>
    %40 = vector.shape_cast %39 : vector<8xf32> to vector<8x1xf32>
    %41 = vector.broadcast %40 : vector<8x1xf32> to vector<8x128xf32>
    %42 = arith.divf %38, %41 : vector<8x128xf32>
    %cst_12 = arith.constant 8.000000e+00 : f32
    %43 = vector.broadcast %cst_12 : f32 to vector<8x128xf32>
    %44 = arith.divf %42, %43 : vector<8x128xf32>
    %cst_13 = arith.constant dense<0.000000e+00> : vector<128xf32>
    %45 = vector.multi_reduction <add>, %44, %cst_13 [0] : vector<8x128xf32> to vector<128xf32>
    %46 = vector.shape_cast %45 : vector<128xf32> to vector<1x128xf32>
    %47 = vector.broadcast %46 : vector<1x128xf32> to vector<8x128xf32>
    %48 = arith.divf %44, %47 : vector<8x128xf32>
    %cst_14 = arith.constant 1.280000e+02 : f32
    %49 = vector.broadcast %cst_14 : f32 to vector<8x128xf32>
    %50 = arith.divf %48, %49 : vector<8x128xf32>
    %cst_15 = arith.constant dense<0.000000e+00> : vector<8xf32>
    %51 = vector.multi_reduction <add>, %50, %cst_15 [1] : vector<8x128xf32> to vector<8xf32>
    %52 = vector.shape_cast %51 : vector<8xf32> to vector<8x1xf32>
    %53 = vector.broadcast %52 : vector<8x1xf32> to vector<8x128xf32>
    %54 = arith.divf %50, %53 : vector<8x128xf32>
    %cst_16 = arith.constant 8.000000e+00 : f32
    %55 = vector.broadcast %cst_16 : f32 to vector<8x128xf32>
    %56 = arith.divf %54, %55 : vector<8x128xf32>
    %cst_17 = arith.constant dense<0.000000e+00> : vector<128xf32>
    %57 = vector.multi_reduction <add>, %56, %cst_17 [0] : vector<8x128xf32> to vector<128xf32>
    %58 = vector.shape_cast %57 : vector<128xf32> to vector<1x128xf32>
    %59 = vector.broadcast %58 : vector<1x128xf32> to vector<8x128xf32>
    %60 = arith.divf %56, %59 : vector<8x128xf32>
    %cst_18 = arith.constant 1.280000e+02 : f32
    %61 = vector.broadcast %cst_18 : f32 to vector<8x128xf32>
    %62 = arith.divf %60, %61 : vector<8x128xf32>
    %cst_19 = arith.constant 1.280000e+02 : f32
    %63 = vector.broadcast %cst_19 : f32 to vector<8x128xf32>
    %64 = arith.mulf %62, %63 : vector<8x128xf32>
    %cst_20 = arith.constant 5.000000e-02 : f32
    %65 = vector.broadcast %cst_20 : f32 to vector<8x128xf32>
    %66 = arith.divf %16, %65 : vector<8x128xf32>
    %67 = math.exp %66 : vector<8x128xf32>
    %68 = vector.shape_cast %67 : vector<8x128xf32> to vector<1x8x128xf32>
    %cst_21 = arith.constant dense<0.000000e+00> : vector<1xf32>
    %69 = vector.multi_reduction <add>, %68, %cst_21 [1, 2] : vector<1x8x128xf32> to vector<1xf32>
    %70 = vector.shape_cast %69 : vector<1xf32> to vector<1x1x1xf32>
    %71 = vector.extract %70[0, 0, 0] : f32 from vector<1x1x1xf32>
    %72 = vector.broadcast %71 : f32 to vector<1x1xf32>
    %73 = vector.broadcast %72 : vector<1x1xf32> to vector<8x128xf32>
    %74 = arith.divf %67, %73 : vector<8x128xf32>
    %cst_22 = arith.constant dense<0.000000e+00> : vector<8xf32>
    %75 = vector.multi_reduction <add>, %74, %cst_22 [1] : vector<8x128xf32> to vector<8xf32>
    %76 = vector.shape_cast %75 : vector<8xf32> to vector<8x1xf32>
    %77 = vector.broadcast %76 : vector<8x1xf32> to vector<8x128xf32>
    %78 = arith.divf %74, %77 : vector<8x128xf32>
    %cst_23 = arith.constant 8.000000e+00 : f32
    %79 = vector.broadcast %cst_23 : f32 to vector<8x128xf32>
    %80 = arith.divf %78, %79 : vector<8x128xf32>
    %cst_24 = arith.constant dense<0.000000e+00> : vector<128xf32>
    %81 = vector.multi_reduction <add>, %80, %cst_24 [0] : vector<8x128xf32> to vector<128xf32>
    %82 = vector.shape_cast %81 : vector<128xf32> to vector<1x128xf32>
    %83 = vector.broadcast %82 : vector<1x128xf32> to vector<8x128xf32>
    %84 = arith.divf %80, %83 : vector<8x128xf32>
    %cst_25 = arith.constant 1.280000e+02 : f32
    %85 = vector.broadcast %cst_25 : f32 to vector<8x128xf32>
    %86 = arith.divf %84, %85 : vector<8x128xf32>
    %cst_26 = arith.constant dense<0.000000e+00> : vector<8xf32>
    %87 = vector.multi_reduction <add>, %86, %cst_26 [1] : vector<8x128xf32> to vector<8xf32>
    %88 = vector.shape_cast %87 : vector<8xf32> to vector<8x1xf32>
    %89 = vector.broadcast %88 : vector<8x1xf32> to vector<8x128xf32>
    %90 = arith.divf %86, %89 : vector<8x128xf32>
    %cst_27 = arith.constant 8.000000e+00 : f32
    %91 = vector.broadcast %cst_27 : f32 to vector<8x128xf32>
    %92 = arith.divf %90, %91 : vector<8x128xf32>
    %cst_28 = arith.constant dense<0.000000e+00> : vector<128xf32>
    %93 = vector.multi_reduction <add>, %92, %cst_28 [0] : vector<8x128xf32> to vector<128xf32>
    %94 = vector.shape_cast %93 : vector<128xf32> to vector<1x128xf32>
    %95 = vector.broadcast %94 : vector<1x128xf32> to vector<8x128xf32>
    %96 = arith.divf %92, %95 : vector<8x128xf32>
    %cst_29 = arith.constant 1.280000e+02 : f32
    %97 = vector.broadcast %cst_29 : f32 to vector<8x128xf32>
    %98 = arith.divf %96, %97 : vector<8x128xf32>
    %cst_30 = arith.constant dense<0.000000e+00> : vector<8xf32>
    %99 = vector.multi_reduction <add>, %98, %cst_30 [1] : vector<8x128xf32> to vector<8xf32>
    %100 = vector.shape_cast %99 : vector<8xf32> to vector<8x1xf32>
    %101 = vector.broadcast %100 : vector<8x1xf32> to vector<8x128xf32>
    %102 = arith.divf %98, %101 : vector<8x128xf32>
    %cst_31 = arith.constant 8.000000e+00 : f32
    %103 = vector.broadcast %cst_31 : f32 to vector<8x128xf32>
    %104 = arith.divf %102, %103 : vector<8x128xf32>
    %cst_32 = arith.constant dense<0.000000e+00> : vector<128xf32>
    %105 = vector.multi_reduction <add>, %104, %cst_32 [0] : vector<8x128xf32> to vector<128xf32>
    %106 = vector.shape_cast %105 : vector<128xf32> to vector<1x128xf32>
    %107 = vector.broadcast %106 : vector<1x128xf32> to vector<8x128xf32>
    %108 = arith.divf %104, %107 : vector<8x128xf32>
    %cst_33 = arith.constant 1.280000e+02 : f32
    %109 = vector.broadcast %cst_33 : f32 to vector<8x128xf32>
    %110 = arith.divf %108, %109 : vector<8x128xf32>
    %cst_34 = arith.constant 1.280000e+02 : f32
    %111 = vector.broadcast %cst_34 : f32 to vector<8x128xf32>
    %112 = arith.mulf %110, %111 : vector<8x128xf32>
    %cst_35 = arith.constant 5.000000e-01 : f32
    %113 = vector.broadcast %cst_35 : f32 to vector<8x128xf32>
    %114 = arith.divf %15, %113 : vector<8x128xf32>
    %cst_36 = arith.constant dense<0xFF800000> : vector<128xf32>
    %115 = vector.multi_reduction <maximumf>, %114, %cst_36 [0] : vector<8x128xf32> to vector<128xf32>
    %116 = vector.shape_cast %115 : vector<128xf32> to vector<1x128xf32>
    %117 = vector.broadcast %116 : vector<1x128xf32> to vector<8x128xf32>
    %118 = arith.subf %114, %117 : vector<8x128xf32>
    %119 = math.exp %118 : vector<8x128xf32>
    %cst_37 = arith.constant dense<0.000000e+00> : vector<128xf32>
    %120 = vector.multi_reduction <add>, %119, %cst_37 [0] : vector<8x128xf32> to vector<128xf32>
    %121 = vector.shape_cast %120 : vector<128xf32> to vector<1x128xf32>
    %122 = math.log %121 : vector<1x128xf32>
    %123 = vector.broadcast %122 : vector<1x128xf32> to vector<8x128xf32>
    %124 = arith.subf %118, %123 : vector<8x128xf32>
    %cst_38 = arith.constant 5.000000e-01 : f32
    %125 = vector.broadcast %cst_38 : f32 to vector<8x128xf32>
    %126 = arith.divf %16, %125 : vector<8x128xf32>
    %cst_39 = arith.constant dense<0xFF800000> : vector<128xf32>
    %127 = vector.multi_reduction <maximumf>, %126, %cst_39 [0] : vector<8x128xf32> to vector<128xf32>
    %128 = vector.shape_cast %127 : vector<128xf32> to vector<1x128xf32>
    %129 = vector.broadcast %128 : vector<1x128xf32> to vector<8x128xf32>
    %130 = arith.subf %126, %129 : vector<8x128xf32>
    %131 = math.exp %130 : vector<8x128xf32>
    %cst_40 = arith.constant dense<0.000000e+00> : vector<128xf32>
    %132 = vector.multi_reduction <add>, %131, %cst_40 [0] : vector<8x128xf32> to vector<128xf32>
    %133 = vector.shape_cast %132 : vector<128xf32> to vector<1x128xf32>
    %134 = math.log %133 : vector<1x128xf32>
    %135 = vector.broadcast %134 : vector<1x128xf32> to vector<8x128xf32>
    %136 = arith.subf %130, %135 : vector<8x128xf32>
    %137 = arith.mulf %64, %136 : vector<8x128xf32>
    %138 = arith.mulf %112, %124 : vector<8x128xf32>
    %139 = arith.addf %137, %138 : vector<8x128xf32>
    %140 = vector.shape_cast %139 : vector<8x128xf32> to vector<1x8x128xf32>
    %cst_41 = arith.constant dense<0.000000e+00> : vector<1xf32>
    %141 = vector.multi_reduction <add>, %140, %cst_41 [1, 2] : vector<1x8x128xf32> to vector<1xf32>
    %142 = vector.shape_cast %141 : vector<1xf32> to vector<1x1x1xf32>
    %143 = vector.extract %142[0, 0, 0] : f32 from vector<1x1x1xf32>
    %144 = vector.broadcast %143 : f32 to vector<1x1xf32>
    %cst_42 = arith.constant 0.000000e+00 : f32
    %145 = vector.broadcast %cst_42 : f32 to vector<1x1xf32>
    %146 = arith.subf %145, %144 : vector<1x1xf32>
    %cst_43 = arith.constant 1.280000e+02 : f32
    %147 = vector.broadcast %cst_43 : f32 to vector<1x1xf32>
    %148 = arith.divf %146, %147 : vector<1x1xf32>
    %c0_44 = arith.constant 0 : index
    %c0_45 = arith.constant 0 : index
    %149 = vector.load %arg3[%c0_44, %c0_45] : memref<1x1xf32, #tpu.memory_space<vmem>>, vector<1x1xf32>
    tpu.vector_store %arg3[%c0_44, %c0_45], %148 {strides = array<i32>} : memref<1x1xf32, #tpu.memory_space<vmem>>, vector<1x1xf32>,
    return
  }
  func.func @transform_0(%arg0: i32) -> (i32, i32) {
    %c0_i32 = arith.constant 0 : i32
    %c0_i32_0 = arith.constant 0 : i32
    %c0_i32_1 = arith.constant 0 : i32
    return %c0_i32, %c0_i32_0 : i32, i32
  }
  func.func @transform_1(%arg0: i32) -> (i32, i32) {
    %c0_i32 = arith.constant 0 : i32
    %c0_i32_0 = arith.constant 0 : i32
    %c0_i32_1 = arith.constant 0 : i32
    return %c0_i32, %c0_i32_0 : i32, i32
  }
  func.func @transform_2(%arg0: i32) -> (i32, i32) {
    %c0_i32 = arith.constant 0 : i32
    %c0_i32_0 = arith.constant 0 : i32
    %c0_i32_1 = arith.constant 0 : i32
    return %c0_i32, %c0_i32_0 : i32, i32
  }
}

</mosaic_0001>

<llo_original>
// kernel: tpu_custom_call.1
$region0: #{tpu_custom_call.1}
  #allocation0 [shape = 'u32[]', space=smem, size = 0x4, offset = 0x4, fixed_abs, tag = 'smem constant byte address 0x4 - core index']
  #allocation1 [shape = 'u32[144,128]{1,0:T(1,128)}', space=vmem, size = 0x12000, scoped, tag = 'internal scratch']
  %s0 = inlined_call_operand.vmem [shape: f32[256,32], index: 0, kind: input, shape index: {}]
  %s1 = inlined_call_operand.vmem [shape: f32[8,32], index: 1, kind: input, shape index: {}]
  %s2 = inlined_call_operand.hbm [shape: f32[1,1], index: 2, kind: output, shape index: {}]
  %s3 = sld [smem:[#allocation0]]
  $region18: #{tpu_custom_call.1} parent=0
    _
  %s5 = ssub.s32 1, %s3
  %s6 = scalar_select 0, %s5, %s3
  $region1: #{tpu_custom_call.1} parent=0
    #allocation2 [shape = 'u8[512]{0}', space=vmem, size = 0x400, scoped, tag = 'output window, operand 0, single buffered']
    #allocation3 [shape = 's32[1]{0}', space=sflag, size = 0x4, scoped, tag = 'scoped memory for tpu_custom_call.1']
    %7 = vsyncpa [#allocation3], 0
    // Predicated region
    $region2: #{tpu_custom_call.1} parent=1 // pred_check
      _
    $region3: #{tpu_custom_call.1} parent=1 // pred_check_branch
      %9 = sbr.rel (0) target = $region5
    $region4: #{tpu_custom_call.1} parent=1 // pred_region
      _
    $region5: #{tpu_custom_call.1} parent=1 // pred_fallthru
      _
    // Predicated region
    $region6: #{tpu_custom_call.1} parent=1 // pred_check
      _
    $region7: #{tpu_custom_call.1} parent=1 // pred_check_branch
      %11 = sbr.rel (0) target = $region9
    $region8: #{tpu_custom_call.1} parent=1 // pred_region
      _
    $region9: #{tpu_custom_call.1} parent=1 // pred_fallthru
      _
    %v12 = vld [vmem:[%s0] sm:$0xff]
    %v13 = vld [vmem:[%s0 + $0x8] sm:$0xff]
    %v14 = vld [vmem:[%s0 + $0x10] sm:$0xff]
    %v15 = vld [vmem:[%s0 + $0x18] sm:$0xff]
    %v16 = vld [vmem:[%s0 + $0x20] sm:$0xff]
    %v17 = vld [vmem:[%s0 + $0x28] sm:$0xff]
    %v18 = vld [vmem:[%s0 + $0x30] sm:$0xff]
    %v19 = vld [vmem:[%s0 + $0x38] sm:$0xff]
    %v20 = vld [vmem:[%s0 + $0x40] sm:$0xff]
    %v21 = vld [vmem:[%s0 + $0x48] sm:$0xff]
    %v22 = vld [vmem:[%s0 + $0x50] sm:$0xff]
    %v23 = vld [vmem:[%s0 + $0x58] sm:$0xff]
    %v24 = vld [vmem:[%s0 + $0x60] sm:$0xff]
    %v25 = vld [vmem:[%s0 + $0x68] sm:$0xff]
    %v26 = vld [vmem:[%s0 + $0x70] sm:$0xff]
    %v27 = vld [vmem:[%s0 + $0x78] sm:$0xff]
    %v28 = vld [vmem:[%s0 + $0x80] sm:$0xff]
    %v29 = vld [vmem:[%s0 + $0x88] sm:$0xff]
    %v30 = vld [vmem:[%s0 + $0x90] sm:$0xff]
    %v31 = vld [vmem:[%s0 + $0x98] sm:$0xff]
    %v32 = vld [vmem:[%s0 + $0xa0] sm:$0xff]
    %v33 = vld [vmem:[%s0 + $0xa8] sm:$0xff]
    %v34 = vld [vmem:[%s0 + $0xb0] sm:$0xff]
    %v35 = vld [vmem:[%s0 + $0xb8] sm:$0xff]
    %v36 = vld [vmem:[%s0 + $0xc0] sm:$0xff]
    %v37 = vld [vmem:[%s0 + $0xc8] sm:$0xff]
    %v38 = vld [vmem:[%s0 + $0xd0] sm:$0xff]
    %v39 = vld [vmem:[%s0 + $0xd8] sm:$0xff]
    %v40 = vld [vmem:[%s0 + $0xe0] sm:$0xff]
    %v41 = vld [vmem:[%s0 + $0xe8] sm:$0xff]
    %v42 = vld [vmem:[%s0 + $0xf0] sm:$0xff]
    %v43 = vld [vmem:[%s0 + $0xf8] sm:$0xff]
    %v44 = vld [vmem:[%s1] sm:$0xff]
    %v45 = vmul.f32 %v12, %v12
    %v46 = vmul.f32 %v13, %v13
    %v47 = vmul.f32 %v14, %v14
    %v48 = vmul.f32 %v15, %v15
    %v49 = vmul.f32 %v16, %v16
    %v50 = vmul.f32 %v17, %v17
    %v51 = vmul.f32 %v18, %v18
    %v52 = vmul.f32 %v19, %v19
    %v53 = vmul.f32 %v20, %v20
    %v54 = vmul.f32 %v21, %v21
    %v55 = vmul.f32 %v22, %v22
    %v56 = vmul.f32 %v23, %v23
    %v57 = vmul.f32 %v24, %v24
    %v58 = vmul.f32 %v25, %v25
    %v59 = vmul.f32 %v26, %v26
    %v60 = vmul.f32 %v27, %v27
    %v61 = vmul.f32 %v28, %v28
    %v62 = vmul.f32 %v29, %v29
    %v63 = vmul.f32 %v30, %v30
    %v64 = vmul.f32 %v31, %v31
    %v65 = vmul.f32 %v32, %v32
    %v66 = vmul.f32 %v33, %v33
    %v67 = vmul.f32 %v34, %v34
    %v68 = vmul.f32 %v35, %v35
    %v69 = vmul.f32 %v36, %v36
    %v70 = vmul.f32 %v37, %v37
    %v71 = vmul.f32 %v38, %v38
    %v72 = vmul.f32 %v39, %v39
    %v73 = vmul.f32 %v40, %v40
    %v74 = vmul.f32 %v41, %v41
    %v75 = vmul.f32 %v42, %v42
    %v76 = vmul.f32 %v43, %v43
    %vm77 = vcmask 261120
    %v78 = vsel %vm77, %v45, 0.0
    %79 = vadd.xlane.f32.xlu0 %v78
    %v80 = vpop.xlane.xlu0 %79
    %v81 = vsel %vm77, %v46, 0.0
    %82 = vadd.xlane.f32.xlu0 %v81
    %v83 = vpop.xlane.xlu0 %82
    %v84 = vsel %vm77, %v47, 0.0
    %85 = vadd.xlane.f32.xlu0 %v84
    %v86 = vpop.xlane.xlu0 %85
    %v87 = vsel %vm77, %v48, 0.0
    %88 = vadd.xlane.f32.xlu0 %v87
    %v89 = vpop.xlane.xlu0 %88
    %v90 = vsel %vm77, %v49, 0.0
    %91 = vadd.xlane.f32.xlu0 %v90
    %v92 = vpop.xlane.xlu0 %91
    %v93 = vsel %vm77, %v50, 0.0
    %94 = vadd.xlane.f32.xlu0 %v93
    %v95 = vpop.xlane.xlu0 %94
    %v96 = vsel %vm77, %v51, 0.0
    %97 = vadd.xlane.f32.xlu0 %v96
    %v98 = vpop.xlane.xlu0 %97
    %v99 = vsel %vm77, %v52, 0.0
    %100 = vadd.xlane.f32.xlu0 %v99
    %v101 = vpop.xlane.xlu0 %100
    %v102 = vsel %vm77, %v53, 0.0
    %103 = vadd.xlane.f32.xlu0 %v102
    %v104 = vpop.xlane.xlu0 %103
    %v105 = vsel %vm77, %v54, 0.0
    %106 = vadd.xlane.f32.xlu0 %v105
    %v107 = vpop.xlane.xlu0 %106
    %v108 = vsel %vm77, %v55, 0.0
    %109 = vadd.xlane.f32.xlu0 %v108
    %v110 = vpop.xlane.xlu0 %109
    %v111 = vsel %vm77, %v56, 0.0
    %112 = vadd.xlane.f32.xlu0 %v111
    %v113 = vpop.xlane.xlu0 %112
    %v114 = vsel %vm77, %v57, 0.0
    %115 = vadd.xlane.f32.xlu0 %v114
    %v116 = vpop.xlane.xlu0 %115
    %v117 = vsel %vm77, %v58, 0.0
    %118 = vadd.xlane.f32.xlu0 %v117
    %v119 = vpop.xlane.xlu0 %118
    %v120 = vsel %vm77, %v59, 0.0
    %121 = vadd.xlane.f32.xlu0 %v120
    %v122 = vpop.xlane.xlu0 %121
    %v123 = vsel %vm77, %v60, 0.0
    %124 = vadd.xlane.f32.xlu0 %v123
    %v125 = vpop.xlane.xlu0 %124
    %v126 = vsel %vm77, %v61, 0.0
    %127 = vadd.xlane.f32.xlu0 %v126
    %v128 = vpop.xlane.xlu0 %127
    %v129 = vsel %vm77, %v62, 0.0
    %130 = vadd.xlane.f32.xlu0 %v129
    %v131 = vpop.xlane.xlu0 %130
    %v132 = vsel %vm77, %v63, 0.0
    %133 = vadd.xlane.f32.xlu0 %v132
    %v134 = vpop.xlane.xlu0 %133
    %v135 = vsel %vm77, %v64, 0.0
    %136 = vadd.xlane.f32.xlu0 %v135
    %v137 = vpop.xlane.xlu0 %136
    %v138 = vsel %vm77, %v65, 0.0
    %139 = vadd.xlane.f32.xlu0 %v138
    %v140 = vpop.xlane.xlu0 %139
    %v141 = vsel %vm77, %v66, 0.0
    %142 = vadd.xlane.f32.xlu0 %v141
    %v143 = vpop.xlane.xlu0 %142
    %v144 = vsel %vm77, %v67, 0.0
    %145 = vadd.xlane.f32.xlu0 %v144
    %v146 = vpop.xlane.xlu0 %145
    %v147 = vsel %vm77, %v68, 0.0
    %148 = vadd.xlane.f32.xlu0 %v147
    %v149 = vpop.xlane.xlu0 %148
    %v150 = vsel %vm77, %v69, 0.0
    %151 = vadd.xlane.f32.xlu0 %v150
    %v152 = vpop.xlane.xlu0 %151
    %v153 = vsel %vm77, %v70, 0.0
    %154 = vadd.xlane.f32.xlu0 %v153
    %v155 = vpop.xlane.xlu0 %154
    %v156 = vsel %vm77, %v71, 0.0
    %157 = vadd.xlane.f32.xlu0 %v156
    %v158 = vpop.xlane.xlu0 %157
    %v159 = vsel %vm77, %v72, 0.0
    %160 = vadd.xlane.f32.xlu0 %v159
    %v161 = vpop.xlane.xlu0 %160
    %v162 = vsel %vm77, %v73, 0.0
    %163 = vadd.xlane.f32.xlu0 %v162
    %v164 = vpop.xlane.xlu0 %163
    %v165 = vsel %vm77, %v74, 0.0
    %166 = vadd.xlane.f32.xlu0 %v165
    %v167 = vpop.xlane.xlu0 %166
    %v168 = vsel %vm77, %v75, 0.0
    %169 = vadd.xlane.f32.xlu0 %v168
    %v170 = vpop.xlane.xlu0 %169
    %v171 = vsel %vm77, %v76, 0.0
    %172 = vadd.xlane.f32.xlu0 %v171
    %v173 = vpop.xlane.xlu0 %172
    %v174 = vrsqrt.pop %v80
    %v175 = vrsqrt.pop %v83
    %v176 = vrsqrt.pop %v86
    %v177 = vrsqrt.pop %v89
    %v178 = vrsqrt.pop %v92
    %v179 = vrsqrt.pop %v95
    %v180 = vrsqrt.pop %v98
    %v181 = vrsqrt.pop %v101
    %v182 = vrsqrt.pop %v104
    %v183 = vrsqrt.pop %v107
    %v184 = vrsqrt.pop %v110
    %v185 = vrsqrt.pop %v113
    %v186 = vrsqrt.pop %v116
    %v187 = vrsqrt.pop %v119
    %v188 = vrsqrt.pop %v122
    %v189 = vrsqrt.pop %v125
    %v190 = vrsqrt.pop %v128
    %v191 = vrsqrt.pop %v131
    %v192 = vrsqrt.pop %v134
    %v193 = vrsqrt.pop %v137
    %v194 = vrsqrt.pop %v140
    %v195 = vrsqrt.pop %v143
    %v196 = vrsqrt.pop %v146
    %v197 = vrsqrt.pop %v149
    %v198 = vrsqrt.pop %v152
    %v199 = vrsqrt.pop %v155
    %v200 = vrsqrt.pop %v158
    %v201 = vrsqrt.pop %v161
    %v202 = vrsqrt.pop %v164
    %v203 = vrsqrt.pop %v167
    %v204 = vrsqrt.pop %v170
    %v205 = vrsqrt.pop %v173
    %v206 = vmul.f32 %v12, %v174
    %v207 = vmul.f32 %v13, %v175
    %v208 = vmul.f32 %v14, %v176
    %v209 = vmul.f32 %v15, %v177
    %v210 = vmul.f32 %v16, %v178
    %v211 = vmul.f32 %v17, %v179
    %v212 = vmul.f32 %v18, %v180
    %v213 = vmul.f32 %v19, %v181
    %v214 = vmul.f32 %v20, %v182
    %v215 = vmul.f32 %v21, %v183
    %v216 = vmul.f32 %v22, %v184
    %v217 = vmul.f32 %v23, %v185
    %v218 = vmul.f32 %v24, %v186
    %v219 = vmul.f32 %v25, %v187
    %v220 = vmul.f32 %v26, %v188
    %v221 = vmul.f32 %v27, %v189
    %v222 = vmul.f32 %v28, %v190
    %v223 = vmul.f32 %v29, %v191
    %v224 = vmul.f32 %v30, %v192
    %v225 = vmul.f32 %v31, %v193
    %v226 = vmul.f32 %v32, %v194
    %v227 = vmul.f32 %v33, %v195
    %v228 = vmul.f32 %v34, %v196
    %v229 = vmul.f32 %v35, %v197
    %v230 = vmul.f32 %v36, %v198
    %v231 = vmul.f32 %v37, %v199
    %v232 = vmul.f32 %v38, %v200
    %v233 = vmul.f32 %v39, %v201
    %v234 = vmul.f32 %v40, %v202
    %v235 = vmul.f32 %v41, %v203
    %v236 = vmul.f32 %v42, %v204
    %v237 = vmul.f32 %v43, %v205
    %v238 = vmul.f32 %v44, %v44
    %v239 = vsel %vm77, %v238, 0.0
    %240 = vadd.xlane.f32.xlu0 %v239
    %v241 = vpop.xlane.xlu0 %240
    %v242 = vrsqrt.pop %v241
    %v243 = vmul.f32 %v44, %v242
    %v245 = vsel %vm77, %v243, 0
    %v248 = vsel %vm77, %v206, 0
    %v251 = vsel %vm77, %v207, 0
    %v254 = vsel %vm77, %v208, 0
    %v257 = vsel %vm77, %v209, 0
    %v260 = vsel %vm77, %v210, 0
    %v263 = vsel %vm77, %v211, 0
    %v266 = vsel %vm77, %v212, 0
    %v269 = vsel %vm77, %v213, 0
    %v272 = vsel %vm77, %v214, 0
    %v275 = vsel %vm77, %v215, 0
    %v278 = vsel %vm77, %v216, 0
    %v281 = vsel %vm77, %v217, 0
    %v284 = vsel %vm77, %v218, 0
    %v287 = vsel %vm77, %v219, 0
    %v290 = vsel %vm77, %v220, 0
    %v293 = vsel %vm77, %v221, 0
    %v296 = vsel %vm77, %v222, 0
    %v299 = vsel %vm77, %v223, 0
    %v302 = vsel %vm77, %v224, 0
    %v305 = vsel %vm77, %v225, 0
    %v308 = vsel %vm77, %v226, 0
    %v311 = vsel %vm77, %v227, 0
    %v314 = vsel %vm77, %v228, 0
    %v317 = vsel %vm77, %v229, 0
    %v320 = vsel %vm77, %v230, 0
    %v323 = vsel %vm77, %v231, 0
    %v326 = vsel %vm77, %v232, 0
    %v329 = vsel %vm77, %v233, 0
    %v332 = vsel %vm77, %v234, 0
    %v335 = vsel %vm77, %v235, 0
    %v338 = vsel %vm77, %v236, 0
    %v341 = vsel %vm77, %v237, 0
    %343 = vmatprep.subr.mxu0 0.0
    %344 = vmatpush1.xpose.msra.mxu0 %v293
    %345 = vmatprep.subr.mxu0 0.0
    %346 = vmatpush1.xpose.msra.mxu0 %v290
    %347 = vmatprep.subr.mxu0 0.0
    %348 = vmatpush1.xpose.msra.mxu0 %v287
    %349 = vmatprep.subr.mxu0 0.0
    %350 = vmatpush1.xpose.msra.mxu0 %v284
    %351 = vmatprep.subr.mxu0 0.0
    %352 = vmatpush1.xpose.msra.mxu0 %v281
    %353 = vmatprep.subr.mxu0 0.0
    %354 = vmatpush1.xpose.msra.mxu0 %v278
    %355 = vmatprep.subr.mxu0 0.0
    %356 = vmatpush1.xpose.msra.mxu0 %v275
    %357 = vmatprep.subr.mxu0 0.0
    %358 = vmatpush1.xpose.msra.mxu0 %v272
    %359 = vmatprep.subr.mxu0 0.0
    %360 = vmatpush1.xpose.msra.mxu0 %v269
    %361 = vmatprep.subr.mxu0 0.0
    %362 = vmatpush1.xpose.msra.mxu0 %v266
    %363 = vmatprep.subr.mxu0 0.0
    %364 = vmatpush1.xpose.msra.mxu0 %v263
    %365 = vmatprep.subr.mxu0 0.0
    %366 = vmatpush1.xpose.msra.mxu0 %v260
    %367 = vmatprep.subr.mxu0 0.0
    %368 = vmatpush1.xpose.msra.mxu0 %v257
    %369 = vmatprep.subr.mxu0 0.0
    %370 = vmatpush1.xpose.msra.mxu0 %v254
    %371 = vmatprep.subr.mxu0 0.0
    %372 = vmatpush1.xpose.msra.mxu0 %v251
    %373 = vmatprep.subr.mxu0 0.0
    %374 = vmatpush1.xpose.msra.mxu0 %v248
    %375 = vmatprep.subr.mxu0 0.0
    %376 = vmatpush2.xpose.msra.mxu0 %v341
    %377 = vmatprep.subr.mxu0 0.0
    %378 = vmatpush2.xpose.msra.mxu0 %v338
    %379 = vmatprep.subr.mxu0 0.0
    %380 = vmatpush2.xpose.msra.mxu0 %v335
    %381 = vmatprep.subr.mxu0 0.0
    %382 = vmatpush2.xpose.msra.mxu0 %v332
    %383 = vmatprep.subr.mxu0 0.0
    %384 = vmatpush2.xpose.msra.mxu0 %v329
    %385 = vmatprep.subr.mxu0 0.0
    %386 = vmatpush2.xpose.msra.mxu0 %v326
    %387 = vmatprep.subr.mxu0 0.0
    %388 = vmatpush2.xpose.msra.mxu0 %v323
    %389 = vmatprep.subr.mxu0 0.0
    %390 = vmatpush2.xpose.msra.mxu0 %v320
    %391 = vmatprep.subr.mxu0 0.0
    %392 = vmatpush2.xpose.msra.mxu0 %v317
    %393 = vmatprep.subr.mxu0 0.0
    %394 = vmatpush2.xpose.msra.mxu0 %v314
    %395 = vmatprep.subr.mxu0 0.0
    %396 = vmatpush2.xpose.msra.mxu0 %v311
    %397 = vmatprep.subr.mxu0 0.0
    %398 = vmatpush2.xpose.msra.mxu0 %v308
    %399 = vmatprep.subr.mxu0 0.0
    %400 = vmatpush2.xpose.msra.mxu0 %v305
    %401 = vmatprep.subr.mxu0 0.0
    %402 = vmatpush2.xpose.msra.mxu0 %v302
    %403 = vmatprep.subr.mxu0 0.0
    %404 = vmatpush2.xpose.msra.mxu0 %v299
    %405 = vmatprep.subr.mxu0 0.0
    %406 = vmatpush2.xpose.msra.mxu0 %v296
    %407 = vmatprep.mubr.f32.mxu0 0.0
    %408 = vmatmul.mubr.f32.gmra.mxu0 %v245
    %v409 = vpop.f32.mrf.mxu0
    %v410 = vadd.f32 0.0, %v409
    %v411 = vpop.f32.mrf.mxu0
    %v412 = vadd.f32 0.0, %v411
    %413 = vdwg.mxu0
    %v414 = vrcp.pop 0.05
    %v415 = vmul.f32 %v410, %v414
    %v416 = vmul.f32 %v415, 1.442695
    %v417 = vpow.pop %v416
    %418 = vadd.xlane.f32.xlu0 %v417
    %v419 = vpop.xlane.xlu0 %418
    %v420 = vrot.slane %v419, 4
    %v421 = vadd.f32 %v419, %v420
    %v422 = vrot.slane %v421, 2
    %v423 = vadd.f32 %v421, %v422
    %v424 = vrot.slane %v423, 1
    %v425 = vadd.f32 %v423, %v424
    %s426 = vtos %v425
    %v427 = vstv %s426
    %v428 = vrcp.pop %v427
    %v429 = vmul.f32 %v417, %v428
    %430 = vadd.xlane.f32.xlu0 %v429
    %v431 = vpop.xlane.xlu0 %430
    %v432 = vrcp.pop %v431
    %v433 = vmul.f32 %v429, %v432
    %v434 = vrcp.pop 8.0
    %v435 = vmul.f32 %v433, %v434
    %v436 = vrot.slane %v435, 4
    %v437 = vadd.f32 %v435, %v436
    %v438 = vrot.slane %v437, 2
    %v439 = vadd.f32 %v437, %v438
    %v440 = vrot.slane %v439, 1
    %v441 = vadd.f32 %v439, %v440
    %v442 = vrcp.pop %v441
    %v443 = vmul.f32 %v435, %v442
    %v444 = vrcp.pop 128.0
    %v445 = vmul.f32 %v443, %v444
    %446 = vadd.xlane.f32.xlu0 %v445
    %v447 = vpop.xlane.xlu0 %446
    %v448 = vrcp.pop %v447
    %v449 = vmul.f32 %v445, %v448
    %v450 = vmul.f32 %v449, %v434
    %v451 = vrot.slane %v450, 4
    %v452 = vadd.f32 %v450, %v451
    %v453 = vrot.slane %v452, 2
    %v454 = vadd.f32 %v452, %v453
    %v455 = vrot.slane %v454, 1
    %v456 = vadd.f32 %v454, %v455
    %v457 = vrcp.pop %v456
    %v458 = vmul.f32 %v450, %v457
    %v459 = vmul.f32 %v458, %v444
    %460 = vadd.xlane.f32.xlu0 %v459
    %v461 = vpop.xlane.xlu0 %460
    %v462 = vrcp.pop %v461
    %v463 = vmul.f32 %v459, %v462
    %v464 = vmul.f32 %v463, %v434
    %v465 = vrot.slane %v464, 4
    %v466 = vadd.f32 %v464, %v465
    %v467 = vrot.slane %v466, 2
    %v468 = vadd.f32 %v466, %v467
    %v469 = vrot.slane %v468, 1
    %v470 = vadd.f32 %v468, %v469
    %v471 = vrcp.pop %v470
    %v472 = vmul.f32 %v464, %v471
    %v473 = vmul.f32 %v472, %v444
    %v474 = vmul.f32 %v473, 128.0
    %v475 = vmul.f32 %v412, %v414
    %v476 = vmul.f32 %v475, 1.442695
    %v477 = vpow.pop %v476
    %478 = vadd.xlane.f32.xlu0 %v477
    %v479 = vpop.xlane.xlu0 %478
    %v480 = vrot.slane %v479, 4
    %v481 = vadd.f32 %v479, %v480
    %v482 = vrot.slane %v481, 2
    %v483 = vadd.f32 %v481, %v482
    %v484 = vrot.slane %v483, 1
    %v485 = vadd.f32 %v483, %v484
    %s486 = vtos %v485
    %v487 = vstv %s486
    %v488 = vrcp.pop %v487
    %v489 = vmul.f32 %v477, %v488
    %490 = vadd.xlane.f32.xlu0 %v489
    %v491 = vpop.xlane.xlu0 %490
    %v492 = vrcp.pop %v491
    %v493 = vmul.f32 %v489, %v492
    %v494 = vmul.f32 %v493, %v434
    %v495 = vrot.slane %v494, 4
    %v496 = vadd.f32 %v494, %v495
    %v497 = vrot.slane %v496, 2
    %v498 = vadd.f32 %v496, %v497
    %v499 = vrot.slane %v498, 1
    %v500 = vadd.f32 %v498, %v499
    %v501 = vrcp.pop %v500
    %v502 = vmul.f32 %v494, %v501
    %v503 = vmul.f32 %v502, %v444
    %504 = vadd.xlane.f32.xlu0 %v503
    %v505 = vpop.xlane.xlu0 %504
    %v506 = vrcp.pop %v505
    %v507 = vmul.f32 %v503, %v506
    %v508 = vmul.f32 %v507, %v434
    %v509 = vrot.slane %v508, 4
    %v510 = vadd.f32 %v508, %v509
    %v511 = vrot.slane %v510, 2
    %v512 = vadd.f32 %v510, %v511
    %v513 = vrot.slane %v512, 1
    %v514 = vadd.f32 %v512, %v513
    %v515 = vrcp.pop %v514
    %v516 = vmul.f32 %v508, %v515
    %v517 = vmul.f32 %v516, %v444
    %518 = vadd.xlane.f32.xlu0 %v517
    %v519 = vpop.xlane.xlu0 %518
    %v520 = vrcp.pop %v519
    %v521 = vmul.f32 %v517, %v520
    %v522 = vmul.f32 %v521, %v434
    %v523 = vrot.slane %v522, 4
    %v524 = vadd.f32 %v522, %v523
    %v525 = vrot.slane %v524, 2
    %v526 = vadd.f32 %v524, %v525
    %v527 = vrot.slane %v526, 1
    %v528 = vadd.f32 %v526, %v527
    %v529 = vrcp.pop %v528
    %v530 = vmul.f32 %v522, %v529
    %v531 = vmul.f32 %v530, %v444
    %v532 = vmul.f32 %v531, 128.0
    %v533 = vrcp.pop 0.5
    %v534 = vmul.f32 %v410, %v533
    %v535 = vrot.slane %v534, 4
    %v536 = vmax.f32 %v534, %v535
    %v537 = vrot.slane %v536, 2
    %v538 = vmax.f32 %v536, %v537
    %v539 = vrot.slane %v538, 1
    %v540 = vmax.f32 %v538, %v539
    %v541 = vsub.f32 %v534, %v540
    %v542 = vmul.f32 %v541, 1.442695
    %v543 = vpow.pop %v542
    %v544 = vrot.slane %v543, 4
    %v545 = vadd.f32 %v543, %v544
    %v546 = vrot.slane %v545, 2
    %v547 = vadd.f32 %v545, %v546
    %v548 = vrot.slane %v547, 1
    %v549 = vadd.f32 %v547, %v548
    %v550 = vlog2.pop %v549
    %v551 = vmul.f32 %v550, 0.6931472
    %v552 = vsub.f32 %v541, %v551
    %v553 = vmul.f32 %v412, %v533
    %v554 = vrot.slane %v553, 4
    %v555 = vmax.f32 %v553, %v554
    %v556 = vrot.slane %v555, 2
    %v557 = vmax.f32 %v555, %v556
    %v558 = vrot.slane %v557, 1
    %v559 = vmax.f32 %v557, %v558
    %v560 = vsub.f32 %v553, %v559
    %v561 = vmul.f32 %v560, 1.442695
    %v562 = vpow.pop %v561
    %v563 = vrot.slane %v562, 4
    %v564 = vadd.f32 %v562, %v563
    %v565 = vrot.slane %v564, 2
    %v566 = vadd.f32 %v564, %v565
    %v567 = vrot.slane %v566, 1
    %v568 = vadd.f32 %v566, %v567
    %v569 = vlog2.pop %v568
    %v570 = vmul.f32 %v569, 0.6931472
    %v571 = vsub.f32 %v560, %v570
    %v572 = vmul.f32 %v474, %v571
    %v573 = vmul.f32 %v532, %v552
    %v574 = vadd.f32 %v572, %v573
    %575 = vadd.xlane.f32.xlu0 %v574
    %v576 = vpop.xlane.xlu0 %575
    %v577 = vrot.slane %v576, 4
    %v578 = vadd.f32 %v576, %v577
    %v579 = vrot.slane %v578, 2
    %v580 = vadd.f32 %v578, %v579
    %v581 = vrot.slane %v580, 1
    %v582 = vadd.f32 %v580, %v581
    %s583 = vtos %v582
    %v584 = vstv %s583
    %v585 = vsub.f32 0.0, %v584
    %v586 = vmul.f32 %v585, %v444
    %vm587 = vcmask 0
    %588 = vst.msk [vmem:[#allocation2] sm:$0x1] %vm587, %v586
    // Predicated region
    $region10: #{tpu_custom_call.1} parent=1 // pred_check
      _
    $region11: #{tpu_custom_call.1} parent=1 // pred_check_branch
      %590 = sbr.rel (0) target = $region13
    $region12: #{tpu_custom_call.1} parent=1 // pred_region
      %s592 = ssub.s32 16, 16
      %593 = vsyncadd [#allocation3], %s592
      %s595 = sshll.u32 [#allocation2], 4
      %s596 = int_to_ptr.vmem [resolvable:$true] %s595
      %598 = dma.vmem_to_hbm [thread:$0]  %s596, 16, %s2, [#allocation3]
    $region13: #{tpu_custom_call.1} parent=1 // pred_fallthru
      _
    // Predicated region
    $region14: #{tpu_custom_call.1} parent=1 // pred_check
      _
    $region15: #{tpu_custom_call.1} parent=1 // pred_check_branch
      %600 = sbr.rel (0) target = $region17
    $region16: #{tpu_custom_call.1} parent=1 // pred_region
      %601 = dma.done [#allocation3], 16
    $region17: #{tpu_custom_call.1} parent=1 // pred_fallthru
      _
    %602 = vsyncpa [#allocation3], 1

</llo_original>
